<compile_context>
chip_gen: v6e
topology: v6e:2x2x1
jax: 0.10.0
libtpu: 0.0.40
codegen_flags: <defaults>
</compile_context>

<pallas_src>
import functools

import jax
import jax.numpy as jnp
import numpy as np
from jax.experimental import pallas as pl
from jax.experimental.pallas import tpu as pltpu

_LANE = 128
_WORKSET_BUDGET = 8 << 20      # 2 inputs x 2 pipeline buffers working-set cap
_TARGET_BLOCK_BYTES = 2 << 20  # ~2 MiB per input block amortizes ~0.35 us/step
_MAX_ROWS = 8192               # absolute row-tile cap (keeps blocks ~2 MiB at small C)


def _choose_tiles(B, C, itemsize):
    """C-, dtype- and VMEM-aware tile selection."""
    min_rows = B if B <= _LANE else _LANE

    # --- reduction (C) axis: keep full rows unless even the minimal row tile
    #     would blow the working-set budget; then split into 128-lane chunks.
    if 2 * 2 * min_rows * C * itemsize <= _WORKSET_BUDGET:
        tile_c = C
    else:
        tile_c = (_WORKSET_BUDGET // (2 * 2 * min_rows * itemsize)) // _LANE * _LANE
        tile_c = max(_LANE, min(tile_c, C))

    # --- batch (B) axis.
    if B <= _LANE:
        # Single block covering the whole batch: block dims equal to the array
        # dims are always legal (no 8/128 divisibility requirement).
        tile_b = B
    else:
        cap_rows = _WORKSET_BUDGET // (2 * 2 * tile_c * itemsize)   # >= 128 by construction
        want_rows = _TARGET_BLOCK_BYTES // max(1, tile_c * itemsize)
        steps_rows = -(-B // 4)            # >= 4 grid steps when B allows (v7x megacore)
        tile_b = min(cap_rows, max(_LANE, want_rows), steps_rows, _MAX_ROWS, B)
        # Lane-dense (1, tile_b) output block => tile_b must be a multiple of 128.
        tile_b = max(_LANE, (tile_b // _LANE) * _LANE)
    return tile_b, tile_c


def _mean_square_y_kernel(x1_ref, x2_ref, o_ref, acc_ref, *,
                          inv_c, c_total, tile_c, ragged_c):
    """One (tile_b, tile_c) block: diff -> square -> row-sum -> accumulate."""
    k = pl.program_id(1)
    nc = pl.num_programs(1)

    @pl.when(k == 0)
    def _init():
        acc_ref[...] = jnp.zeros_like(acc_ref)

    d = x1_ref[...].astype(jnp.float32) - x2_ref[...].astype(jnp.float32)
    if ragged_c:
        # Last C-chunk is ragged: zero the out-of-range lanes so they do not
        # contaminate the real row sums (input padding values are undefined).
        col = jax.lax.broadcasted_iota(jnp.int32, (1, d.shape[1]), 1) + k * tile_c
        d = jnp.where(col < c_total, d, 0.0)

    # Row sums land lane-major (rank-1) -> accumulate into the (1, tile_b) row.
    part = jnp.sum(d * d, axis=1)
    acc_ref[...] += part[None, :]

    @pl.when(k == nc - 1)
    def _finalize():
        # Lane-dense store: (1, tile_b) row, unmasked vector stores.
        o_ref[...] = (acc_ref[...] * inv_c).astype(o_ref.dtype)


def mean_square_y(x1, x2):
    """Pallas implementation of MeanSquareY(linear=True).forward((x1, x2))."""
    assert x1.shape == x2.shape and x1.ndim == 2, "linear=True expects (B, C) pairs"
    B, C = x1.shape
    in_dtype = x1.dtype
    itemsize = jnp.dtype(in_dtype).itemsize

    tile_b, tile_c = _choose_tiles(B, C, itemsize)
    nb = -(-B // tile_b)
    nc = -(-C // tile_c)
    ragged_c = (C % tile_c) != 0

    # Explicit VMEM limit sized from the actual working set (2 inputs x 2 bufs)
    # plus output/scratch headroom; always well under v7x's 64 MiB physical.
    workset = 2 * 2 * tile_b * tile_c * itemsize
    vmem_limit = int(min(64 << 20, max(4 << 20, 2 * workset + (2 << 20))))

    in_spec = pl.BlockSpec((tile_b, tile_c), lambda i, k: (i, k))

    out = pl.pallas_call(
        functools.partial(
            _mean_square_y_kernel,
            inv_c=1.0 / C, c_total=C, tile_c=tile_c, ragged_c=ragged_c),
        out_shape=jax.ShapeDtypeStruct((1, B), in_dtype),
        grid_spec=pltpu.PrefetchScalarGridSpec(
            num_scalar_prefetch=0,
            grid=(nb, nc),                       # reduction (C) axis last
            in_specs=[in_spec, in_spec],
            out_specs=pl.BlockSpec((1, tile_b), lambda i, k: (0, i)),
            scratch_shapes=[pltpu.VMEM((1, tile_b), jnp.float32)],
        ),
        compiler_params=pltpu.CompilerParams(
            dimension_semantics=("parallel", "arbitrary"),
            vmem_limit_bytes=vmem_limit,
        ),
        cost_estimate=pl.CostEstimate(
            flops=3 * B * C,                     # sub + mul + add per element
            transcendentals=0,
            bytes_accessed=2 * B * C * itemsize + B * itemsize,
        ),
    )(x1, x2)

    # (1, B) lane-dense kernel output -> semantically required (B, 1) column.
    return out.reshape(B, 1)


def _reference(x1, x2):
    return jnp.mean((x1 - x2) ** 2, axis=1).reshape(x1.shape[0], -1)


if __name__ == "__main__":
    keys = jax.random.split(jax.random.PRNGKey(0), 4)

    # Small case consistent with the module: a (batch=8, channel_in=64) pair.
    B, C = 8, 64
    x1 = jax.random.normal(keys[0], (B, C), jnp.float32)
    x2 = jax.random.normal(keys[1], (B, C), jnp.float32)
    out = jax.block_until_ready(mean_square_y(x1, x2))
    ref = _reference(x1, x2)
    assert out.shape == (B, 1), out.shape
    assert np.allclose(np.asarray(out), np.asarray(ref), rtol=1e-5, atol=1e-5), \
        "kernel/reference mismatch (small case)"

    # Also exercise the multi-tile path: tile_b=128, 3 batch blocks with a
    # ragged (masked) last block and the lane-dense (1, tile_b) output store.
    B2, C2 = 300, 192
    y1 = jax.random.normal(keys[2], (B2, C2), jnp.float32)
    y2 = jax.random.normal(keys[3], (B2, C2), jnp.float32)
    out2 = jax.block_until_ready(mean_square_y(y1, y2))
    ref2 = _reference(y1, y2)
    assert out2.shape == (B2, 1), out2.shape
    assert np.allclose(np.asarray(out2), np.asarray(ref2), rtol=1e-5, atol=1e-5), \
        "kernel/reference mismatch (ragged multi-tile case)"

    print("KERNEL_OK")
</pallas_src>

<mosaic_0001>
module attributes {stable_mosaic.version = 11 : i64} {
  func.func @_mean_square_y_kernel(%arg0: i32, %arg1: i32, %arg2: memref<8x64xf32, #tpu.memory_space<vmem>>, %arg3: memref<8x64xf32, #tpu.memory_space<vmem>>, %arg4: memref<1x8xf32, #tpu.memory_space<vmem>>, %arg5: memref<1x8xf32, #tpu.memory_space<vmem>>) attributes {dimension_semantics = [#tpu.dimension_semantics<parallel>, #tpu.dimension_semantics<arbitrary>], iteration_bounds = array<i64: 1, 1>, scalar_prefetch = 0 : i64, scratch_operands = 1 : i64, tpu.core_type = #tpu.core_type<tc>, window_params = [{transform_indices = @transform_0, window_bounds = array<i64: 8, 64>}, {transform_indices = @transform_1, window_bounds = array<i64: 8, 64>}, {transform_indices = @transform_2, window_bounds = array<i64: 1, 8>}]} {
    %c0_i32 = arith.constant 0 : i32
    %0 = arith.cmpi eq, %arg1, %c0_i32 : i32
    %1 = arith.extui %0 : i1 to i32
    %c0_i32_0 = arith.constant 0 : i32
    %2 = arith.cmpi ne, %1, %c0_i32_0 : i32
    scf.if %2 {
      %cst_10 = arith.constant 0.000000e+00 : f32
      %15 = vector.broadcast %cst_10 : f32 to vector<1x8xf32>
      %c0_11 = arith.constant 0 : index
      %c0_12 = arith.constant 0 : index
      %16 = vector.load %arg5[%c0_11, %c0_12] : memref<1x8xf32, #tpu.memory_space<vmem>>, vector<1x8xf32>
      tpu.vector_store %arg5[%c0_11, %c0_12], %15 {strides = array<i32>} : memref<1x8xf32, #tpu.memory_space<vmem>>, vector<1x8xf32>,
    } else {
    }
    %c0 = arith.constant 0 : index
    %c0_1 = arith.constant 0 : index
    %3 = vector.load %arg2[%c0, %c0_1] : memref<8x64xf32, #tpu.memory_space<vmem>>, vector<8x64xf32>
    %c0_2 = arith.constant 0 : index
    %c0_3 = arith.constant 0 : index
    %4 = vector.load %arg3[%c0_2, %c0_3] : memref<8x64xf32, #tpu.memory_space<vmem>>, vector<8x64xf32>
    %5 = arith.subf %3, %4 : vector<8x64xf32>
    %6 = arith.mulf %5, %5 : vector<8x64xf32>
    %cst = arith.constant dense<0.000000e+00> : vector<8xf32>
    %7 = vector.multi_reduction <add>, %6, %cst [1] : vector<8x64xf32> to vector<8xf32>
    %c0_4 = arith.constant 0 : index
    %c0_5 = arith.constant 0 : index
    %8 = vector.load %arg5[%c0_4, %c0_5] : memref<1x8xf32, #tpu.memory_space<vmem>>, vector<1x8xf32>
    %9 = vector.shape_cast %7 : vector<8xf32> to vector<1x8xf32>
    %10 = arith.addf %8, %9 : vector<1x8xf32>
    %c0_6 = arith.constant 0 : index
    %c0_7 = arith.constant 0 : index
    %11 = vector.load %arg5[%c0_6, %c0_7] : memref<1x8xf32, #tpu.memory_space<vmem>>, vector<1x8xf32>
    tpu.vector_store %arg5[%c0_6, %c0_7], %10 {strides = array<i32>} : memref<1x8xf32, #tpu.memory_space<vmem>>, vector<1x8xf32>,
    %c0_i32_8 = arith.constant 0 : i32
    %12 = arith.cmpi eq, %arg1, %c0_i32_8 : i32
    %13 = arith.extui %12 : i1 to i32
    %c0_i32_9 = arith.constant 0 : i32
    %14 = arith.cmpi ne, %13, %c0_i32_9 : i32
    scf.if %14 {
      %c0_10 = arith.constant 0 : index
      %c0_11 = arith.constant 0 : index
      %15 = vector.load %arg5[%c0_10, %c0_11] : memref<1x8xf32, #tpu.memory_space<vmem>>, vector<1x8xf32>
      %cst_12 = arith.constant 1.562500e-02 : f32
      %16 = vector.broadcast %cst_12 : f32 to vector<1x8xf32>
      %17 = arith.mulf %15, %16 : vector<1x8xf32>
      %c0_13 = arith.constant 0 : index
      %c0_14 = arith.constant 0 : index
      %18 = vector.load %arg4[%c0_13, %c0_14] : memref<1x8xf32, #tpu.memory_space<vmem>>, vector<1x8xf32>
      tpu.vector_store %arg4[%c0_13, %c0_14], %17 {strides = array<i32>} : memref<1x8xf32, #tpu.memory_space<vmem>>, vector<1x8xf32>,
    } else {
    }
    return
  }
  func.func @transform_0(%arg0: i32, %arg1: i32) -> (i32, i32) {
    %c0_i32 = arith.constant 0 : i32
    return %arg0, %arg1 : i32, i32
  }
  func.func @transform_1(%arg0: i32, %arg1: i32) -> (i32, i32) {
    %c0_i32 = arith.constant 0 : i32
    return %arg0, %arg1 : i32, i32
  }
  func.func @transform_2(%arg0: i32, %arg1: i32) -> (i32, i32) {
    %c0_i32 = arith.constant 0 : i32
    %c0_i32_0 = arith.constant 0 : i32
    return %c0_i32, %arg0 : i32, i32
  }
}

</mosaic_0001>

<llo_original>
// kernel: tpu_custom_call.1
$region0: #{tpu_custom_call.1}
  #allocation0 [shape = 'u32[]', space=smem, size = 0x4, offset = 0x4, fixed_abs, tag = 'smem constant byte address 0x4 - core index']
  #allocation1 [shape = 'u32[144,128]{1,0:T(1,128)}', space=vmem, size = 0x12000, scoped, tag = 'internal scratch']
  #allocation2 [shape = 'f32[1,8]{1,0:T(1,128)}', space=vmem, size = 0x200, scoped, tag = 'scratch operand']
  %s0 = inlined_call_operand.hbm [shape: f32[8,64], index: 0, kind: input, shape index: {}]
  %s1 = inlined_call_operand.hbm [shape: f32[8,64], index: 1, kind: input, shape index: {}]
  %s2 = inlined_call_operand.hbm [shape: f32[1,8], index: 2, kind: output, shape index: {}]
  %s3 = sld [smem:[#allocation0]]
  $region34: #{tpu_custom_call.1} parent=0
    _
  %s5 = ssub.s32 1, %s3
  %s6 = scalar_select 0, %s5, %s3
  $region1: #{tpu_custom_call.1} parent=0
    #allocation3 [shape = 'u8[4096]{0}', space=vmem, size = 0x1000, scoped, tag = 'input window, operand 0, single buffered']
    #allocation4 [shape = 's32[1]{0}', space=sflag, size = 0x4, scoped, tag = 'scoped memory for tpu_custom_call.1']
    #allocation5 [shape = 's32[1]{0}', space=sflag, size = 0x4, scoped, tag = 'scoped memory for tpu_custom_call.1']
    #allocation6 [shape = 'u8[4096]{0}', space=vmem, size = 0x1000, scoped, tag = 'input window, operand 1, single buffered']
    #allocation7 [shape = 's32[1]{0}', space=sflag, size = 0x4, scoped, tag = 'scoped memory for tpu_custom_call.1']
    #allocation8 [shape = 'u8[512]{0}', space=vmem, size = 0x400, scoped, tag = 'output window, operand 0, single buffered']
    %7 = vsyncpa [#allocation4], 0
    %8 = vsyncpa [#allocation7], 0
    %9 = vsyncpa [#allocation5], 0
    // Predicated region
    $region2: #{tpu_custom_call.1} parent=1 // pred_check
      _
    $region3: #{tpu_custom_call.1} parent=1 // pred_check_branch
      %11 = sbr.rel (0) target = $region5
    $region4: #{tpu_custom_call.1} parent=1 // pred_region
      %s13 = ssub.s32 128, 128
      %14 = vsyncadd [#allocation4], %s13
      %s16 = sshll.u32 [#allocation3], 4
      %s17 = int_to_ptr.vmem [resolvable:$true] %s16
      %19 = dma.hbm_to_vmem [thread:$0]  %s0, 128, %s17, [#allocation4]
    $region5: #{tpu_custom_call.1} parent=1 // pred_fallthru
      _
    // Predicated region
    $region6: #{tpu_custom_call.1} parent=1 // pred_check
      _
    $region7: #{tpu_custom_call.1} parent=1 // pred_check_branch
      %21 = sbr.rel (0) target = $region9
    $region8: #{tpu_custom_call.1} parent=1 // pred_region
      %s23 = ssub.s32 128, 128
      %24 = vsyncadd [#allocation7], %s23
      %s26 = sshll.u32 [#allocation6], 4
      %s27 = int_to_ptr.vmem [resolvable:$true] %s26
      %29 = dma.hbm_to_vmem [thread:$0]  %s1, 128, %s27, [#allocation7]
    $region9: #{tpu_custom_call.1} parent=1 // pred_fallthru
      _
    // Predicated region
    $region10: #{tpu_custom_call.1} parent=1 // pred_check
      _
    $region11: #{tpu_custom_call.1} parent=1 // pred_check_branch
      %31 = sbr.rel (0) target = $region13
    $region12: #{tpu_custom_call.1} parent=1 // pred_region
      %32 = dma.done [#allocation4], 128
    $region13: #{tpu_custom_call.1} parent=1 // pred_fallthru
      _
    // Predicated region
    $region14: #{tpu_custom_call.1} parent=1 // pred_check
      _
    $region15: #{tpu_custom_call.1} parent=1 // pred_check_branch
      %34 = sbr.rel (0) target = $region17
    $region16: #{tpu_custom_call.1} parent=1 // pred_region
      %35 = dma.done [#allocation7], 128
    $region17: #{tpu_custom_call.1} parent=1 // pred_fallthru
      _
    %p36 = scmp.eq.s32.totalorder 0, 0
    // Predicated region
    $region18: #{tpu_custom_call.1} parent=1 // pred_check
      %p37 = pneg %p36
    $region19: #{tpu_custom_call.1} parent=1 // pred_check_branch
      %39 = sbr.rel (%p37) target = $region21
    $region20: #{tpu_custom_call.1} parent=1 // pred_region
      %vm40 = vcmask 57344
      %41 = vst.msk [vmem:[#allocation2] sm:$0x1] %vm40, 0.0
    $region21: #{tpu_custom_call.1} parent=1 // pred_fallthru
      _
    %v42 = vld [vmem:[#allocation3] sm:$0xff]
    %v43 = vld [vmem:[#allocation6] sm:$0xff]
    %v44 = vsub.f32 %v42, %v43
    %v45 = vmul.f32 %v44, %v44
    %vm46 = vcmask 523264
    %v47 = vsel %vm46, %v45, 0.0
    %48 = vadd.xlane.f32.xlu0 %v47
    %v49 = vpop.xlane.xlu0 %48
    %v50 = vld [vmem:[#allocation2] sm:$0x1]
    %v52 = vlaneseq
    %v53 = vshrl.u32 %v52, 7
    %v54 = vsub.s32 0, %v53
    %v55 = vrot.slane %v49, %v54
    %v56 = vlaneseq
    %v57 = vshrl.u32 %v56, 7
    %v58 = vsub.s32 1, %v57
    %v59 = vrot.slane %v49, %v58
    %v60 = vlaneseq
    %v61 = vshrl.u32 %v60, 7
    %v62 = vsub.s32 2, %v61
    %v63 = vrot.slane %v49, %v62
    %v64 = vlaneseq
    %v65 = vshrl.u32 %v64, 7
    %v66 = vsub.s32 3, %v65
    %v67 = vrot.slane %v49, %v66
    %v68 = vlaneseq
    %v69 = vshrl.u32 %v68, 7
    %v70 = vsub.s32 4, %v69
    %v71 = vrot.slane %v49, %v70
    %v72 = vlaneseq
    %v73 = vshrl.u32 %v72, 7
    %v74 = vsub.s32 5, %v73
    %v75 = vrot.slane %v49, %v74
    %v76 = vlaneseq
    %v77 = vshrl.u32 %v76, 7
    %v78 = vsub.s32 6, %v77
    %v79 = vrot.slane %v49, %v78
    %v80 = vlaneseq
    %v81 = vshrl.u32 %v80, 7
    %v82 = vsub.s32 7, %v81
    %v83 = vrot.slane %v49, %v82
    %v84 = vcombine.low %v55, %v59
    %v85 = vcombine.low %v63, %v67
    %v86 = vcombine.low %v71, %v75
    %v87 = vcombine.low %v79, %v83
    %v89 = vunpack.c.l.s4 1966171168
    %v90 = vunpack.c.0.s8 %v89
    %v91 = vlaneseq
    %v92 = vshrl.u32 %v91, 7
    %v93 = vsub.s32 %v90, %v92
    %v94 = vrot.slane %v84, %v93
    %v96 = vunpack.c.l.s4 1966171168
    %v97 = vunpack.c.0.s8 %v96
    %v98 = vlaneseq
    %v99 = vshrl.u32 %v98, 7
    %v100 = vsub.s32 %v97, %v99
    %v101 = vrot.slane %v85, %v100
    %v103 = vunpack.c.l.s4 1966171168
    %v104 = vunpack.c.0.s8 %v103
    %v105 = vlaneseq
    %v106 = vshrl.u32 %v105, 7
    %v107 = vsub.s32 %v104, %v106
    %v108 = vrot.slane %v86, %v107
    %v110 = vunpack.c.l.s4 1966171168
    %v111 = vunpack.c.0.s8 %v110
    %v112 = vlaneseq
    %v113 = vshrl.u32 %v112, 7
    %v114 = vsub.s32 %v111, %v113
    %v115 = vrot.slane %v87, %v114
    %v116 = vcombine.low %v94, %v101
    %v117 = vcombine.low %v108, %v115
    %v119 = vunpack.c.l.s4 1966171168
    %v120 = vunpack.c.0.s8 %v119
    %v121 = vlaneseq
    %v122 = vshrl.u32 %v121, 7
    %v123 = vsub.s32 %v120, %v122
    %v124 = vrot.slane %v116, %v123
    %v126 = vunpack.c.l.s4 1966171168
    %v127 = vunpack.c.0.s8 %v126
    %v128 = vlaneseq
    %v129 = vshrl.u32 %v128, 7
    %v130 = vsub.s32 %v127, %v129
    %v131 = vrot.slane %v117, %v130
    %v132 = vcombine.low %v124, %v131
    %133 = vset.pattern.permute.xlu0 0
    %134 = vperm.xlu0 %133, %v132
    %v135 = vpop.permute.xlu0 %134
    %v136 = vlaneseq
    %v137 = vand.u32 %v136, 127
    %v138 = vlaneseq
    %v139 = vshrl.u32 %v138, 7
    %v140 = vsub.s32 %v137, %v139
    %v141 = vrot.slane %v135, %v140
    %v143 = vunpack.c.l.s4 1966171168
    %v144 = vunpack.c.0.s8 %v143
    %v145 = vlaneseq
    %v146 = vshrl.u32 %v145, 7
    %v147 = vsub.s32 %v144, %v146
    %v148 = vrot.slane %v141, %v147
    %v150 = vunpack.c.l.s4 1966171168
    %v151 = vunpack.c.0.s8 %v150
    %v152 = vlaneseq
    %v153 = vshrl.u32 %v152, 7
    %v154 = vsub.s32 %v151, %v153
    %v155 = vrot.slane %v148, %v154
    %v157 = vadd.f32 %v50, %v155
    %vm158 = vcmask 57344
    %159 = vst.msk [vmem:[#allocation2] sm:$0x1] %vm158, %v157
    // Predicated region
    $region22: #{tpu_custom_call.1} parent=1 // pred_check
      %p160 = pneg %p36
    $region23: #{tpu_custom_call.1} parent=1 // pred_check_branch
      %162 = sbr.rel (%p160) target = $region25
    $region24: #{tpu_custom_call.1} parent=1 // pred_region
      %v163 = vld [vmem:[#allocation2] sm:$0x1]
      %v164 = vmul.f32 %v163, 0.015625
      %165 = vst.msk [vmem:[#allocation8] sm:$0x1] %vm158, %v164
    $region25: #{tpu_custom_call.1} parent=1 // pred_fallthru
      _
    // Predicated region
    $region26: #{tpu_custom_call.1} parent=1 // pred_check
      _
    $region27: #{tpu_custom_call.1} parent=1 // pred_check_branch
      %167 = sbr.rel (0) target = $region29
    $region28: #{tpu_custom_call.1} parent=1 // pred_region
      %s169 = ssub.s32 16, 16
      %170 = vsyncadd [#allocation5], %s169
      %s172 = sshll.u32 [#allocation8], 4
      %s173 = int_to_ptr.vmem [resolvable:$true] %s172
      %175 = dma.vmem_to_hbm [thread:$0]  %s173, 16, %s2, [#allocation5]
    $region29: #{tpu_custom_call.1} parent=1 // pred_fallthru
      _
    // Predicated region
    $region30: #{tpu_custom_call.1} parent=1 // pred_check
      _
    $region31: #{tpu_custom_call.1} parent=1 // pred_check_branch
      %177 = sbr.rel (0) target = $region33
    $region32: #{tpu_custom_call.1} parent=1 // pred_region
      %178 = dma.done [#allocation5], 16
    $region33: #{tpu_custom_call.1} parent=1 // pred_fallthru
      _
    %179 = vsyncpa [#allocation4], 1
    %180 = vsyncpa [#allocation7], 1
    %181 = vsyncpa [#allocation5], 1

</llo_original>
